<compile_context>
chip_gen: v5e
topology: v5e:2x2
jax: 0.10.0
libtpu: 0.0.40
codegen_flags: <defaults>
</compile_context>

<pallas_src>
import functools

import jax
import jax.numpy as jnp
from jax.experimental import pallas as pl
from jax.experimental.pallas import tpu as pltpu


def _vmem_capacity_bytes():
    try:
        info = pltpu.get_tpu_info()
        cap = getattr(info, "vmem_capacity_bytes", None)
        if cap:
            return int(cap)
    except Exception:
        pass
    return 64 * 1024 * 1024  # conservative floor (v7x per-TC VMEM)


def _pred_length_kernel(x_ref, w1_ref, b1_ref, w2_ref, b2_ref, o_ref, acc_ref, *, inv_s, seq_len):
    # x_ref: (Bblk, Sblk, H); w1: (H, H); b1: (1, H); w2: (H, Lpad); b2: (1, Lpad)
    # o_ref: (Bblk, Lpad); acc_ref: (Bblk, H) f32 scratch, persists across the seq grid axis.
    k = pl.program_id(1)
    block_s = x_ref.shape[1]  # static

    @pl.when(k == 0)
    def _():
        acc_ref[...] = jnp.zeros_like(acc_ref)

    x = x_ref[...]
    if seq_len % block_s != 0:
        # Last seq block is partial: rows past the true sequence length hold unspecified
        # values (Pallas partial-block read) and must not enter the sum.  For full blocks
        # the mask is all-true and the select is a no-op hidden under the DMA.
        row = jax.lax.broadcasted_iota(jnp.int32, x.shape, 1)
        valid = row < (seq_len - k * block_s)
        x = jnp.where(valid, x, jnp.zeros((), x.dtype))

    # Accumulate the seq partial sum in f32 (convert happens per-vreg on the VPU).
    acc_ref[...] += jnp.sum(x.astype(jnp.float32), axis=1)

    @pl.when(k == pl.num_programs(1) - 1)
    def _():
        h_sum = acc_ref[...]                                                  # (Bblk, H) f32
        # Mean folded into the matmul epilogue: relu((sum @ W1) * (1/S) + b1)
        h = jnp.dot(h_sum, w1_ref[...], preferred_element_type=jnp.float32)
        h = h * inv_s + b1_ref[...]
        h = jnp.maximum(h, 0.0)
        # TODO(synk): training-mode Dropout (hidden_dropout_prob) not applied; eval semantics only.

        logits = jnp.dot(h, w2_ref[...], preferred_element_type=jnp.float32)  # (Bblk, Lpad)
        logits = logits + b2_ref[...]      # padded lanes carry -1e30 from the padded bias

        # Numerically stable log_softmax along the lane-dense last dim.
        mx = jnp.max(logits, axis=-1, keepdims=True)
        shifted = logits - mx
        lse = jnp.log(jnp.sum(jnp.exp(shifted), axis=-1, keepdims=True))
        o_ref[...] = (shifted - lse).astype(o_ref.dtype)


def predictor_length_forward(x, w1, b1, w2, b2, *, _max_seq_tile=None):
    """x: (B, S, H); w1: (H, H) (in,out); b1: (H,)/(1,H); w2: (H, L) (in,out); b2: (L,)/(1,L).

    Returns {'preds_length': (B, L) float32 log-probabilities}.
    """
    B, S, H = x.shape
    L = w2.shape[1]

    b1 = jnp.asarray(b1, jnp.float32).reshape(1, H)
    b2 = jnp.asarray(b2, jnp.float32).reshape(1, L)

    # ---- lane-dense output: pad L -> multiple of 128 (padded bias lanes = -1e30) ----------
    L_pad = ((L + 127) // 128) * 128
    if L_pad != L:
        w2 = jnp.pad(w2, ((0, 0), (0, L_pad - L)))
        b2 = jnp.pad(b2, ((0, 0), (0, L_pad - L)), constant_values=-1e30)

    # ---- batch tiling (no padding of x; partial last block handled by Pallas) -------------
    if B > 256:
        block_b = 128
    elif B >= 16:
        # >= 2 "parallel" steps so both TensorCores get work on v7x megacore.
        block_b = ((-(-B // 2) + 7) // 8) * 8
    else:
        block_b = B                         # full-extent: exempt from the 8-sublane rule
    grid_b = -(-B // block_b)

    # ---- seq tiling against a per-generation VMEM budget -----------------------------------
    itemsize = x.dtype.itemsize
    vmem_cap = _vmem_capacity_bytes()
    # Everything except the streamed x tile, counting the pipeline's double buffers.
    fixed = (2 * H * H * w1.dtype.itemsize          # w1 (double-buffered by the pipeline)
             + 2 * H * 4                            # b1
             + 2 * H * L_pad * w2.dtype.itemsize    # w2 (padded)
             + 2 * L_pad * 4                        # b2 (padded)
             + 2 * block_b * L_pad * 4              # output (double-buffered)
             + block_b * H * 4)                     # f32 accumulator scratch
    budget = (vmem_cap * 3) // 4 - fixed - (4 << 20)
    per_row = 2 * block_b * H * itemsize            # double-buffered x tile, per seq row
    max_block_s = max(8, budget // per_row)
    if _max_seq_tile is not None:                   # test hook: force small seq tiles
        max_block_s = min(max_block_s, _max_seq_tile)

    if S <= max_block_s:
        block_s = S                                 # single full-extent tile (no 8-divisibility rule)
    else:
        cand = (max_block_s // 8) * 8
        steps_cand = (S + cand - 1) // cand
        block_s = cand                              # largest tile; tail masked in-kernel
        for d in range(cand, 7, -8):                # prefer a divisor of S if it costs no extra steps
            if S % d == 0 and S // d <= steps_cand:
                block_s = d
                break
    grid_k = -(-S // block_s)

    # Explicit VMEM limit from the actual configuration (double buffers for every input).
    vmem_bytes = fixed + 2 * block_b * block_s * H * itemsize + (2 << 20)
    vmem_limit = int(min(max(vmem_bytes, 16 << 20), max(vmem_cap - (1 << 20), 16 << 20)))

    kernel = functools.partial(_pred_length_kernel, inv_s=1.0 / S, seq_len=S)

    out = pl.pallas_call(
        kernel,
        out_shape=jax.ShapeDtypeStruct((B, L_pad), jnp.float32),
        grid_spec=pltpu.PrefetchScalarGridSpec(
            num_scalar_prefetch=0,
            grid=(grid_b, grid_k),
            in_specs=[
                pl.BlockSpec((block_b, block_s, H), lambda b, k: (b, k, 0)),  # x tile (streamed)
                pl.BlockSpec((H, H), lambda b, k: (0, 0)),                    # w1 (grid-invariant)
                pl.BlockSpec((1, H), lambda b, k: (0, 0)),                    # b1
                pl.BlockSpec((H, L_pad), lambda b, k: (0, 0)),                # w2 (padded)
                pl.BlockSpec((1, L_pad), lambda b, k: (0, 0)),                # b2 (padded)
            ],
            out_specs=pl.BlockSpec((block_b, L_pad), lambda b, k: (b, 0)),
            scratch_shapes=[pltpu.VMEM((block_b, H), jnp.float32)],
        ),
        compiler_params=pltpu.CompilerParams(
            dimension_semantics=("parallel", "arbitrary"),
            vmem_limit_bytes=vmem_limit,
        ),
    )(x, w1, b1, w2, b2)

    return {"preds_length": out[:, :L]}


def _reference(x, w1, b1, w2, b2):
    h = jnp.mean(x, axis=1)
    h = jnp.maximum(h @ w1 + jnp.reshape(b1, (1, -1)), 0.0)
    return jax.nn.log_softmax(h @ w2 + jnp.reshape(b2, (1, -1)), axis=-1)


if __name__ == "__main__":
    H, L = 32, 16
    key = jax.random.PRNGKey(0)
    kx, k1, kb1, k2, kb2 = jax.random.split(key, 5)

    # Parameters stored as (in, out) so the kernel does h @ W directly
    # (transpose of the torch nn.Linear layout).
    w1 = jax.random.normal(k1, (H, H), dtype=jnp.float32) * 0.05
    b1 = jax.random.normal(kb1, (1, H), dtype=jnp.float32) * 0.05
    w2 = jax.random.normal(k2, (H, L), dtype=jnp.float32) * 0.05
    b2 = jax.random.normal(kb2, (1, L), dtype=jnp.float32) * 0.05

    # (B, S, max_seq_tile_override) — exercises: single-tile path, masked seq tail path,
    # and the split/partial batch-block path.  None = use the real VMEM-derived tile.
    cases = [(2, 8, None), (3, 13, 8), (20, 16, None)]
    for B, S, max_tile in cases:
        kx, sub = jax.random.split(kx)
        x = jax.random.normal(sub, (B, S, H), dtype=jnp.float32)
        out = predictor_length_forward(x, w1, b1, w2, b2, _max_seq_tile=max_tile)
        preds = jax.block_until_ready(out["preds_length"])
        ref = _reference(x, w1, b1, w2, b2)
        assert preds.shape == (B, L)
        assert jnp.allclose(preds, ref, atol=1e-5), f"mismatch vs reference for B={B}, S={S}"

    print("KERNEL_OK")
</pallas_src>

<mosaic_0001>
module attributes {stable_mosaic.version = 11 : i64} {
  func.func @_pred_length_kernel(%arg0: i32, %arg1: i32, %arg2: memref<2x8x32xf32, #tpu.memory_space<vmem>>, %arg3: memref<32x32xf32, #tpu.memory_space<vmem>>, %arg4: memref<1x32xf32, #tpu.memory_space<vmem>>, %arg5: memref<32x128xf32, #tpu.memory_space<vmem>>, %arg6: memref<1x128xf32, #tpu.memory_space<vmem>>, %arg7: memref<2x128xf32, #tpu.memory_space<vmem>>, %arg8: memref<2x32xf32, #tpu.memory_space<vmem>>) attributes {dimension_semantics = [#tpu.dimension_semantics<parallel>, #tpu.dimension_semantics<arbitrary>], iteration_bounds = array<i64: 1, 1>, scalar_prefetch = 0 : i64, scratch_operands = 1 : i64, tpu.core_type = #tpu.core_type<tc>, window_params = [{transform_indices = @transform_0, window_bounds = array<i64: 2, 8, 32>}, {pipeline_mode = #tpu.pipeline_mode<synchronous>, transform_indices = @transform_1, window_bounds = array<i64: 32, 32>}, {pipeline_mode = #tpu.pipeline_mode<synchronous>, transform_indices = @transform_2, window_bounds = array<i64: 1, 32>}, {pipeline_mode = #tpu.pipeline_mode<synchronous>, transform_indices = @transform_3, window_bounds = array<i64: 32, 128>}, {pipeline_mode = #tpu.pipeline_mode<synchronous>, transform_indices = @transform_4, window_bounds = array<i64: 1, 128>}, {transform_indices = @transform_5, window_bounds = array<i64: 2, 128>}]} {
    %c0_i32 = arith.constant 0 : i32
    %0 = arith.cmpi eq, %arg1, %c0_i32 : i32
    %1 = arith.extui %0 : i1 to i32
    %c0_i32_0 = arith.constant 0 : i32
    %2 = arith.cmpi ne, %1, %c0_i32_0 : i32
    scf.if %2 {
      %cst_9 = arith.constant 0.000000e+00 : f32
      %11 = vector.broadcast %cst_9 : f32 to vector<2x32xf32>
      %c0_10 = arith.constant 0 : index
      %c0_11 = arith.constant 0 : index
      %12 = vector.load %arg8[%c0_10, %c0_11] : memref<2x32xf32, #tpu.memory_space<vmem>>, vector<2x32xf32>
      tpu.vector_store %arg8[%c0_10, %c0_11], %11 {strides = array<i32>} : memref<2x32xf32, #tpu.memory_space<vmem>>, vector<2x32xf32>,
    } else {
    }
    %c0 = arith.constant 0 : index
    %c0_1 = arith.constant 0 : index
    %c0_2 = arith.constant 0 : index
    %3 = vector.load %arg2[%c0, %c0_1, %c0_2] : memref<2x8x32xf32, #tpu.memory_space<vmem>>, vector<2x8x32xf32>
    %c0_3 = arith.constant 0 : index
    %c0_4 = arith.constant 0 : index
    %4 = vector.load %arg8[%c0_3, %c0_4] : memref<2x32xf32, #tpu.memory_space<vmem>>, vector<2x32xf32>
    %cst = arith.constant dense<0.000000e+00> : vector<2x32xf32>
    %5 = vector.multi_reduction <add>, %3, %cst [1] : vector<2x8x32xf32> to vector<2x32xf32>
    %6 = arith.addf %4, %5 : vector<2x32xf32>
    %c0_5 = arith.constant 0 : index
    %c0_6 = arith.constant 0 : index
    %7 = vector.load %arg8[%c0_5, %c0_6] : memref<2x32xf32, #tpu.memory_space<vmem>>, vector<2x32xf32>
    tpu.vector_store %arg8[%c0_5, %c0_6], %6 {strides = array<i32>} : memref<2x32xf32, #tpu.memory_space<vmem>>, vector<2x32xf32>,
    %c0_i32_7 = arith.constant 0 : i32
    %8 = arith.cmpi eq, %arg1, %c0_i32_7 : i32
    %9 = arith.extui %8 : i1 to i32
    %c0_i32_8 = arith.constant 0 : i32
    %10 = arith.cmpi ne, %9, %c0_i32_8 : i32
    scf.if %10 {
      %c0_9 = arith.constant 0 : index
      %c0_10 = arith.constant 0 : index
      %11 = vector.load %arg8[%c0_9, %c0_10] : memref<2x32xf32, #tpu.memory_space<vmem>>, vector<2x32xf32>
      %c0_11 = arith.constant 0 : index
      %c0_12 = arith.constant 0 : index
      %12 = vector.load %arg3[%c0_11, %c0_12] : memref<32x32xf32, #tpu.memory_space<vmem>>, vector<32x32xf32>
      %cst_13 = arith.constant dense<0.000000e+00> : vector<2x32xf32>
      %13 = tpu.matmul %11, %12, %cst_13 {dimension_numbers = #tpu.dot_dimension_numbers<[1], [0], [0], [1], [0, 0, 1, 1], [], []>} : vector<2x32xf32>, vector<32x32xf32>, vector<2x32xf32> -> vector<2x32xf32>
      %cst_14 = arith.constant 1.250000e-01 : f32
      %14 = vector.broadcast %cst_14 : f32 to vector<2x32xf32>
      %15 = arith.mulf %13, %14 : vector<2x32xf32>
      %c0_15 = arith.constant 0 : index
      %c0_16 = arith.constant 0 : index
      %16 = vector.load %arg4[%c0_15, %c0_16] : memref<1x32xf32, #tpu.memory_space<vmem>>, vector<1x32xf32>
      %17 = vector.broadcast %16 : vector<1x32xf32> to vector<2x32xf32>
      %18 = arith.addf %15, %17 : vector<2x32xf32>
      %cst_17 = arith.constant 0.000000e+00 : f32
      %19 = vector.broadcast %cst_17 : f32 to vector<2x32xf32>
      %20 = arith.maximumf %18, %19 : vector<2x32xf32>
      %c0_18 = arith.constant 0 : index
      %c0_19 = arith.constant 0 : index
      %21 = vector.load %arg5[%c0_18, %c0_19] : memref<32x128xf32, #tpu.memory_space<vmem>>, vector<32x128xf32>
      %cst_20 = arith.constant dense<0.000000e+00> : vector<2x128xf32>
      %22 = tpu.matmul %20, %21, %cst_20 {dimension_numbers = #tpu.dot_dimension_numbers<[1], [0], [0], [1], [0, 0, 1, 1], [], []>} : vector<2x32xf32>, vector<32x128xf32>, vector<2x128xf32> -> vector<2x128xf32>
      %c0_21 = arith.constant 0 : index
      %c0_22 = arith.constant 0 : index
      %23 = vector.load %arg6[%c0_21, %c0_22] : memref<1x128xf32, #tpu.memory_space<vmem>>, vector<1x128xf32>
      %24 = vector.broadcast %23 : vector<1x128xf32> to vector<2x128xf32>
      %25 = arith.addf %22, %24 : vector<2x128xf32>
      %cst_23 = arith.constant dense<0xFF800000> : vector<2xf32>
      %26 = vector.multi_reduction <maximumf>, %25, %cst_23 [1] : vector<2x128xf32> to vector<2xf32>
      %27 = vector.shape_cast %26 : vector<2xf32> to vector<2x1xf32>
      %28 = vector.broadcast %27 : vector<2x1xf32> to vector<2x128xf32>
      %29 = arith.subf %25, %28 : vector<2x128xf32>
      %30 = math.exp %29 : vector<2x128xf32>
      %cst_24 = arith.constant dense<0.000000e+00> : vector<2xf32>
      %31 = vector.multi_reduction <add>, %30, %cst_24 [1] : vector<2x128xf32> to vector<2xf32>
      %32 = vector.shape_cast %31 : vector<2xf32> to vector<2x1xf32>
      %33 = math.log %32 : vector<2x1xf32>
      %34 = vector.broadcast %33 : vector<2x1xf32> to vector<2x128xf32>
      %35 = arith.subf %29, %34 : vector<2x128xf32>
      %c0_25 = arith.constant 0 : index
      %c0_26 = arith.constant 0 : index
      %36 = vector.load %arg7[%c0_25, %c0_26] : memref<2x128xf32, #tpu.memory_space<vmem>>, vector<2x128xf32>
      tpu.vector_store %arg7[%c0_25, %c0_26], %35 {strides = array<i32>} : memref<2x128xf32, #tpu.memory_space<vmem>>, vector<2x128xf32>,
    } else {
    }
    return
  }
  func.func @transform_0(%arg0: i32, %arg1: i32) -> (i32, i32, i32) {
    %c0_i32 = arith.constant 0 : i32
    %c0_i32_0 = arith.constant 0 : i32
    return %arg0, %arg1, %c0_i32 : i32, i32, i32
  }
  func.func @transform_1(%arg0: i32, %arg1: i32) -> (i32, i32) {
    %c0_i32 = arith.constant 0 : i32
    %c0_i32_0 = arith.constant 0 : i32
    %c0_i32_1 = arith.constant 0 : i32
    return %c0_i32, %c0_i32_0 : i32, i32
  }
  func.func @transform_2(%arg0: i32, %arg1: i32) -> (i32, i32) {
    %c0_i32 = arith.constant 0 : i32
    %c0_i32_0 = arith.constant 0 : i32
    %c0_i32_1 = arith.constant 0 : i32
    return %c0_i32, %c0_i32_0 : i32, i32
  }
  func.func @transform_3(%arg0: i32, %arg1: i32) -> (i32, i32) {
    %c0_i32 = arith.constant 0 : i32
    %c0_i32_0 = arith.constant 0 : i32
    %c0_i32_1 = arith.constant 0 : i32
    return %c0_i32, %c0_i32_0 : i32, i32
  }
  func.func @transform_4(%arg0: i32, %arg1: i32) -> (i32, i32) {
    %c0_i32 = arith.constant 0 : i32
    %c0_i32_0 = arith.constant 0 : i32
    %c0_i32_1 = arith.constant 0 : i32
    return %c0_i32, %c0_i32_0 : i32, i32
  }
  func.func @transform_5(%arg0: i32, %arg1: i32) -> (i32, i32) {
    %c0_i32 = arith.constant 0 : i32
    %c0_i32_0 = arith.constant 0 : i32
    return %arg0, %c0_i32 : i32, i32
  }
}

</mosaic_0001>

<llo_original>
// kernel: tpu_custom_call.1
$region0: #{tpu_custom_call.1}
  #allocation0 [shape = 'u32[]', space=smem, size = 0x4, offset = 0x4, fixed_abs, tag = 'smem constant byte address 0x4 - core index']
  #allocation1 [shape = 'u32[72,128]{1,0:T(1,128)}', space=vmem, size = 0x9000, scoped, tag = 'internal scratch']
  #allocation2 [shape = 'f32[2,32]{1,0:T(2,128)}', space=vmem, size = 0x400, scoped, tag = 'scratch operand']
  %s0 = inlined_call_operand.hbm [shape: f32[2,8,32], index: 0, kind: input, shape index: {}]
  %s1 = inlined_call_operand.hbm [shape: f32[32,32], index: 1, kind: input, shape index: {}]
  %s2 = inlined_call_operand.vmem [shape: f32[1,32], index: 2, kind: input, shape index: {}]
  %s3 = inlined_call_operand.hbm [shape: f32[32,128], index: 3, kind: input, shape index: {}]
  %s4 = inlined_call_operand.vmem [shape: f32[1,128], index: 4, kind: input, shape index: {}]
  %s5 = inlined_call_operand.hbm [shape: f32[2,128], index: 5, kind: output, shape index: {}]
  %s6 = sld [smem:[#allocation0]]
  $region50: #{tpu_custom_call.1} parent=0
    _
  %s8 = ssub.s32 1, %s6
  %s9 = scalar_select 0, %s8, %s6
  $region1: #{tpu_custom_call.1} parent=0
    #allocation3 [shape = 'u8[8192]{0}', space=vmem, size = 0x2000, scoped, tag = 'input window, operand 0, single buffered']
    #allocation4 [shape = 's32[1]{0}', space=sflag, size = 0x4, scoped, tag = 'scoped memory for tpu_custom_call.1']
    #allocation5 [shape = 's32[1]{0}', space=sflag, size = 0x4, scoped, tag = 'scoped memory for tpu_custom_call.1']
    #allocation6 [shape = 'u8[16384]{0}', space=vmem, size = 0x4000, scoped, tag = 'input window, operand 1, single buffered']
    #allocation7 [shape = 's32[1]{0}', space=sflag, size = 0x4, scoped, tag = 'scoped memory for tpu_custom_call.1']
    #allocation8 [shape = 'u8[16384]{0}', space=vmem, size = 0x4000, scoped, tag = 'input window, operand 3, single buffered']
    #allocation9 [shape = 'u8[1024]{0}', space=vmem, size = 0x400, scoped, tag = 'output window, operand 0, single buffered']
    %10 = vsyncpa [#allocation4], 0
    %11 = vsyncpa [#allocation7], 0
    %12 = vsyncpa [#allocation5], 0
    // Predicated region
    $region2: #{tpu_custom_call.1} parent=1 // pred_check
      _
    $region3: #{tpu_custom_call.1} parent=1 // pred_check_branch
      %14 = sbr.rel (0) target = $region5
    $region4: #{tpu_custom_call.1} parent=1 // pred_region
      %16 = vsyncadd [#allocation4], 0
      %s17 = sshll.u32 %s0, 4
      %s18 = int_to_ptr.hbm [resolvable:$true] %s17
      %s19 = sshll.u32 [#allocation3], 4
      %s20 = int_to_ptr.vmem [resolvable:$true] %s19
      %25 = dma.hbm_to_vmem [thread:$0]  %s18, 256, %s20, [#allocation4], 128, 128, 8
    $region5: #{tpu_custom_call.1} parent=1 // pred_fallthru
      _
    // Predicated region
    $region6: #{tpu_custom_call.1} parent=1 // pred_check
      _
    $region7: #{tpu_custom_call.1} parent=1 // pred_check_branch
      %27 = sbr.rel (0) target = $region9
    $region8: #{tpu_custom_call.1} parent=1 // pred_region
      %29 = vsyncadd [#allocation7], 0
      %s30 = sshll.u32 %s1, 4
      %s31 = int_to_ptr.hbm [resolvable:$true] %s30
      %s32 = sshll.u32 [#allocation6], 4
      %s33 = int_to_ptr.vmem [resolvable:$true] %s32
      %38 = dma.hbm_to_vmem [thread:$0]  %s31, 512, %s33, [#allocation7], 128, 128, 8
    $region9: #{tpu_custom_call.1} parent=1 // pred_fallthru
      _
    // Predicated region
    $region10: #{tpu_custom_call.1} parent=1 // pred_check
      _
    $region11: #{tpu_custom_call.1} parent=1 // pred_check_branch
      %40 = sbr.rel (0) target = $region13
    $region12: #{tpu_custom_call.1} parent=1 // pred_region
      _
    $region13: #{tpu_custom_call.1} parent=1 // pred_fallthru
      _
    // Predicated region
    $region14: #{tpu_custom_call.1} parent=1 // pred_check
      _
    $region15: #{tpu_custom_call.1} parent=1 // pred_check_branch
      %42 = sbr.rel (0) target = $region17
    $region16: #{tpu_custom_call.1} parent=1 // pred_region
      %44 = vsyncadd [#allocation7], 0
      %s45 = sshll.u32 %s3, 4
      %s46 = int_to_ptr.hbm [resolvable:$true] %s45
      %s47 = sshll.u32 [#allocation8], 4
      %s48 = int_to_ptr.vmem [resolvable:$true] %s47
      %53 = dma.hbm_to_vmem [thread:$0]  %s46, 512, %s48, [#allocation7], 128, 128, 8
    $region17: #{tpu_custom_call.1} parent=1 // pred_fallthru
      _
    // Predicated region
    $region18: #{tpu_custom_call.1} parent=1 // pred_check
      _
    $region19: #{tpu_custom_call.1} parent=1 // pred_check_branch
      %55 = sbr.rel (0) target = $region21
    $region20: #{tpu_custom_call.1} parent=1 // pred_region
      _
    $region21: #{tpu_custom_call.1} parent=1 // pred_fallthru
      _
    // Predicated region
    $region22: #{tpu_custom_call.1} parent=1 // pred_check
      _
    $region23: #{tpu_custom_call.1} parent=1 // pred_check_branch
      %57 = sbr.rel (0) target = $region25
    $region24: #{tpu_custom_call.1} parent=1 // pred_region
      %59 = dma.done [#allocation4], 256
    $region25: #{tpu_custom_call.1} parent=1 // pred_fallthru
      _
    // Predicated region
    $region26: #{tpu_custom_call.1} parent=1 // pred_check
      _
    $region27: #{tpu_custom_call.1} parent=1 // pred_check_branch
      %61 = sbr.rel (0) target = $region29
    $region28: #{tpu_custom_call.1} parent=1 // pred_region
      %63 = dma.done [#allocation7], 512
    $region29: #{tpu_custom_call.1} parent=1 // pred_fallthru
      _
    // Predicated region
    $region30: #{tpu_custom_call.1} parent=1 // pred_check
      _
    $region31: #{tpu_custom_call.1} parent=1 // pred_check_branch
      %65 = sbr.rel (0) target = $region33
    $region32: #{tpu_custom_call.1} parent=1 // pred_region
      %67 = dma.done [#allocation7], 512
    $region33: #{tpu_custom_call.1} parent=1 // pred_fallthru
      _
    %p68 = scmp.eq.s32.totalorder 0, 0
    // Predicated region
    $region34: #{tpu_custom_call.1} parent=1 // pred_check
      %p69 = pneg %p68
    $region35: #{tpu_custom_call.1} parent=1 // pred_check_branch
      %71 = sbr.rel (%p69) target = $region37
    $region36: #{tpu_custom_call.1} parent=1 // pred_region
      %vm72 = vcmask 254976
      %73 = vst.msk [vmem:[#allocation2] sm:$0x3] %vm72, 0.0
    $region37: #{tpu_custom_call.1} parent=1 // pred_fallthru
      _
    %v74 = vld [vmem:[#allocation3] sm:$0xff]
    %v75 = vld [vmem:[#allocation3 + $0x8] sm:$0xff]
    %v76 = vld [vmem:[#allocation2] sm:$0x3]
    %vm77 = vcmask 261120
    %v78 = vsel %vm77, %v74, 0.0
    %v79 = vrot.slane %v78, 4
    %v80 = vadd.f32 %v78, %v79
    %v81 = vrot.slane %v80, 2
    %v82 = vadd.f32 %v80, %v81
    %v83 = vrot.slane %v82, 1
    %v84 = vadd.f32 %v82, %v83
    %v85 = vsel %vm77, %v75, 0.0
    %v86 = vrot.slane %v85, 4
    %v87 = vadd.f32 %v85, %v86
    %v88 = vrot.slane %v87, 2
    %v89 = vadd.f32 %v87, %v88
    %v90 = vrot.slane %v89, 1
    %v91 = vadd.f32 %v89, %v90
    %vm94 = vcmask 1041409
    %v95 = vsel %vm94, %v91, %v84
    %v97 = vadd.f32 %v76, %v95
    %vm98 = vcmask 254976
    %99 = vst.msk [vmem:[#allocation2] sm:$0x3] %vm98, %v97
    // Predicated region
    $region38: #{tpu_custom_call.1} parent=1 // pred_check
      %p100 = pneg %p68
    $region39: #{tpu_custom_call.1} parent=1 // pred_check_branch
      %102 = sbr.rel (%p100) target = $region41
    $region40: #{tpu_custom_call.1} parent=1 // pred_region
      %v103 = vld [vmem:[#allocation2] sm:$0x3]
      %v104 = vld [vmem:[#allocation6] sm:$0xff]
      %v105 = vld [vmem:[#allocation6 + $0x8] sm:$0xff]
      %v106 = vld [vmem:[#allocation6 + $0x10] sm:$0xff]
      %v107 = vld [vmem:[#allocation6 + $0x18] sm:$0xff]
      %v109 = vsel %vm77, %v103, 0
      %111 = vmatpush.msra.mxu0 0.0
      %112 = vmatpush.msra.mxu0 0.0
      %113 = vmatpush.msra.mxu0 0.0
      %114 = vmatpush.msra.mxu0 0.0
      %115 = vmatpush.msra.mxu0 0.0
      %116 = vmatpush.msra.mxu0 0.0
      %117 = vmatpush.msra.mxu0 0.0
      %118 = vmatpush.msra.mxu0 0.0
      %119 = vmatpush.msra.mxu0 0.0
      %120 = vmatpush.msra.mxu0 0.0
      %121 = vmatpush.msra.mxu0 0.0
      %122 = vmatpush.msra.mxu0 0.0
      %123 = vmatpush.msra.mxu0 %v107
      %124 = vmatpush.msra.mxu0 %v106
      %125 = vmatpush.msra.mxu0 %v105
      %126 = vmatpush.msra.mxu0 %v104
      %127 = vmatmul.f32.gmra.mxu0 %v109
      %v128 = vpop.f32.mrf.mxu0
      %v129 = vadd.f32 0.0, %v128
      %130 = vdwg.mxu0
      %v131 = vmul.f32 %v129, 0.125
      %v132 = vld [vmem:[%s2] sm:$0x1]
      %v134 = vperm.slane %v132, 0
      %v136 = vadd.f32 %v131, %v134
      %v137 = vmax.f32 %v136, 0.0
      %v138 = vld [vmem:[#allocation8] sm:$0xff]
      %v139 = vld [vmem:[#allocation8 + $0x8] sm:$0xff]
      %v140 = vld [vmem:[#allocation8 + $0x10] sm:$0xff]
      %v141 = vld [vmem:[#allocation8 + $0x18] sm:$0xff]
      %v142 = vld [vmem:[%s4] sm:$0x1]
      %v144 = vperm.slane %v142, 0
      %v147 = vsel %vm77, %v137, 0
      %149 = vmatpush.msra.mxu0 0.0
      %150 = vmatpush.msra.mxu0 0.0
      %151 = vmatpush.msra.mxu0 0.0
      %152 = vmatpush.msra.mxu0 0.0
      %153 = vmatpush.msra.mxu0 0.0
      %154 = vmatpush.msra.mxu0 0.0
      %155 = vmatpush.msra.mxu0 0.0
      %156 = vmatpush.msra.mxu0 0.0
      %157 = vmatpush.msra.mxu0 0.0
      %158 = vmatpush.msra.mxu0 0.0
      %159 = vmatpush.msra.mxu0 0.0
      %160 = vmatpush.msra.mxu0 0.0
      %161 = vmatpush.msra.mxu0 %v141
      %162 = vmatpush.msra.mxu0 %v140
      %163 = vmatpush.msra.mxu0 %v139
      %164 = vmatpush.msra.mxu0 %v138
      %165 = vmatmul.f32.gmra.mxu0 %v147
      %v166 = vpop.f32.mrf.mxu0
      %v167 = vadd.f32 %v144, %v166
      %168 = vdwg.mxu0
      %vm169 = vcmask 1041408
      %v170 = vsel %vm169, %v167, -inf
      %171 = vmax.xlane.f32.xlu0 %v170
      %v172 = vpop.xlane.xlu0 %171
      %v173 = vsub.f32 %v167, %v172
      %v174 = vmul.f32 %v173, 1.442695
      %v175 = vpow.pop %v174
      %v176 = vsel %vm169, %v175, 0.0
      %177 = vadd.xlane.f32.xlu0 %v176
      %v178 = vpop.xlane.xlu0 %177
      %v179 = vlog2.pop %v178
      %v180 = vmul.f32 %v179, 0.6931472
      %v181 = vsub.f32 %v173, %v180
      %182 = vst [vmem:[#allocation9] sm:$0x3] %v181
    $region41: #{tpu_custom_call.1} parent=1 // pred_fallthru
      _
    // Predicated region
    $region42: #{tpu_custom_call.1} parent=1 // pred_check
      _
    $region43: #{tpu_custom_call.1} parent=1 // pred_check_branch
      %184 = sbr.rel (0) target = $region45
    $region44: #{tpu_custom_call.1} parent=1 // pred_region
      %186 = vsyncadd [#allocation5], 0
      %s188 = sshll.u32 [#allocation9], 4
      %s189 = int_to_ptr.vmem [resolvable:$true] %s188
      %s190 = sshll.u32 %s5, 4
      %s191 = int_to_ptr.hbm [resolvable:$true] %s190
      %193 = dma.vmem_to_hbm [thread:$0]  %s189, 32, %s191, [#allocation5]
    $region45: #{tpu_custom_call.1} parent=1 // pred_fallthru
      _
    // Predicated region
    $region46: #{tpu_custom_call.1} parent=1 // pred_check
      _
    $region47: #{tpu_custom_call.1} parent=1 // pred_check_branch
      %195 = sbr.rel (0) target = $region49
    $region48: #{tpu_custom_call.1} parent=1 // pred_region
      %197 = dma.done [#allocation5], 32
    $region49: #{tpu_custom_call.1} parent=1 // pred_fallthru
      _
    %198 = vsyncpa [#allocation4], 1
    %199 = vsyncpa [#allocation7], 1
    %200 = vsyncpa [#allocation5], 1

</llo_original>
